<compile_context>
chip_gen: v7x
topology: tpu7x:2x2x1
jax: 0.10.0
libtpu: 0.0.40
codegen_flags: <defaults>
</compile_context>

<pallas_src>
import functools

import jax
import jax.numpy as jnp
from jax.experimental import pallas as pl
from jax.experimental.pallas import tpu as pltpu

EPS = 1e-5                     # PyTorch F.layer_norm default eps
LANES = 128                    # vreg lane width
_TILE_BYTES_CAP = 2 << 20      # ~2 MiB input tile: already at HBM roofline
_DEFAULT_VMEM_LIMIT = 32 << 20 # conservative; fits v7x's 64 MiB physical VMEM


def _round_up(x, m):
    return ((x + m - 1) // m) * m


def _sublane_multiple(dtype):
    # f32 -> 8, bf16 -> 16, int8/fp8 -> 32 (sub-32-bit dtypes pack sublanes).
    return max(8, 32 // jnp.dtype(dtype).itemsize)


def _vmem_limit_bytes():
    # Generation-aware scoped-VMEM request: never ask for more than half the
    # physical VMEM (v7x has only 64 MiB per TC), capped at 32 MiB.
    try:
        cap = int(pltpu.get_tpu_info().vmem_capacity_bytes)
        return min(_DEFAULT_VMEM_LIMIT, max(cap // 2, 8 << 20))
    except Exception:
        return _DEFAULT_VMEM_LIMIT


def _choose_tile_rows(n_rows, d_lane, dtype):
    """Row-tile size: few-MiB tiles, >=8 grid steps preferred, >=2 if possible."""
    itemsize = jnp.dtype(dtype).itemsize
    sub = _sublane_multiple(dtype)
    if n_rows <= sub:
        # Single full-extent block (block dim == array dim is always legal).
        return max(n_rows, 1)

    # Bandwidth cap: ~2 MiB per input tile already sits at ~85% of the HBM
    # roofline; bigger tiles only collapse the grid / pipeline.
    tile = _TILE_BYTES_CAP // max(d_lane * itemsize, 1)
    tile = max(sub, (tile // sub) * sub)

    # Pipeline / megacore cap: prefer >= 8 grid steps (DMA/compute overlap),
    # and at least 2 when the row count allows it so dimension_semantics=
    # ("parallel",) actually splits rows across v7x's two TensorCores.
    for min_steps in (8, 2):
        cap = (n_rows // (min_steps * sub)) * sub
        if cap >= sub:
            tile = min(tile, cap)
            break

    # Never let the block exceed the array's row extent (last block may still
    # be ragged; OOB reads are padded and OOB stores dropped by the pipeline,
    # and per-row normalization never mixes rows).
    return min(tile, (n_rows // sub) * sub)


def _layernorm_kernel_packed(x_ref, gamma_ref, beta_ref, seg_ref, o_ref, *, inv_d):
    # x_ref: (T, P) lane-dense with P = k*D; seg_ref: (P, P) block-diag ones.
    x = x_ref[...].astype(jnp.float32)
    seg = seg_ref[...]
    # Segmented row sums, broadcast back per segment, in one MXU op each
    # (single pass over x; MXU is otherwise idle, XLU stays free).
    sum_x = jnp.dot(x, seg, preferred_element_type=jnp.float32)
    sum_xx = jnp.dot(x * x, seg, preferred_element_type=jnp.float32)
    mean = sum_x * inv_d
    var = jnp.maximum(sum_xx * inv_d - mean * mean, 0.0)   # f32, clamped
    inv = jax.lax.rsqrt(var + EPS)                          # EUP rsqrt
    y = (x - mean) * inv * gamma_ref[...] + beta_ref[...]
    o_ref[...] = y.astype(o_ref.dtype)


def _layernorm_kernel_rows(x_ref, gamma_ref, beta_ref, o_ref, *, inv_d):
    # x_ref: (T, D); gamma_ref/beta_ref: (1, D) f32.
    x = x_ref[...].astype(jnp.float32)
    # Single-pass moments: one pass over the tile, two cross-lane reduces.
    sum_x = jnp.sum(x, axis=-1, keepdims=True)
    sum_xx = jnp.sum(x * x, axis=-1, keepdims=True)
    mean = sum_x * inv_d
    var = jnp.maximum(sum_xx * inv_d - mean * mean, 0.0)
    inv = jax.lax.rsqrt(var + EPS)
    y = (x - mean) * inv * gamma_ref[...] + beta_ref[...]
    o_ref[...] = y.astype(o_ref.dtype)


def layer_norm(x, gamma, beta, *, tile_rows=None):
    """LayerNorm over the last dim of x (any leading dims)."""
    orig_shape = x.shape
    D = orig_shape[-1]
    x2 = x.reshape(-1, D)
    N = x2.shape[0]
    dtype = x2.dtype
    itemsize = jnp.dtype(dtype).itemsize

    # Lane-dense repack for small D (the big measured lever: unmasked vst,
    # full-width DMA).  Falls back to the row-wise kernel otherwise.
    k = 1
    if D < LANES and LANES % D == 0 and N % (LANES // D) == 0:
        k = LANES // D
    # TODO(synk): for D < 128 with N not divisible by k, the fallback path
    # still issues masked vst.msk stores; a padded repack would fix that.

    gamma_f32 = gamma.reshape(1, D).astype(jnp.float32)
    beta_f32 = beta.reshape(1, D).astype(jnp.float32)
    inv_d = 1.0 / float(D)

    if k > 1:
        P = k * D
        n_rows = N // k
        x_in = x2.reshape(n_rows, P)                 # contiguous view, no copy
        gamma_in = jnp.tile(gamma_f32, (1, k))       # (1, P)
        beta_in = jnp.tile(beta_f32, (1, k))         # (1, P)
        # Block-diagonal segment-sum-and-broadcast matrix (P, P), resident.
        lane = jnp.arange(P)
        seg = (lane[:, None] // D == lane[None, :] // D).astype(jnp.float32)
        d_lane = P
    else:
        n_rows = N
        x_in = x2
        gamma_in, beta_in = gamma_f32, beta_f32
        d_lane = D

    if tile_rows is None:
        tile_rows = _choose_tile_rows(n_rows, d_lane, dtype)
    tile_rows = int(tile_rows)
    assert 1 <= tile_rows <= max(n_rows, 1)

    grid = (pl.cdiv(n_rows, tile_rows),)

    # Advisory cost estimate so XLA schedules neighbors of this bandwidth-bound
    # call sensibly.
    vpu_flops = 8 * N * D
    mxu_flops = 4 * n_rows * d_lane * d_lane if k > 1 else 0
    bytes_accessed = 2 * N * D * itemsize + 2 * k * D * 4 + (k > 1) * d_lane * d_lane * 4
    cost = pl.CostEstimate(flops=vpu_flops + mxu_flops,
                           transcendentals=N,
                           bytes_accessed=bytes_accessed)

    x_spec = pl.BlockSpec((tile_rows, d_lane), lambda i: (i, 0))
    param_spec = pl.BlockSpec((1, d_lane), lambda i: (0, 0))   # resident params

    if k > 1:
        kernel = functools.partial(_layernorm_kernel_packed, inv_d=inv_d)
        in_specs = [x_spec, param_spec, param_spec,
                    pl.BlockSpec((d_lane, d_lane), lambda i: (0, 0))]
        args = (x_in, gamma_in, beta_in, seg)
    else:
        kernel = functools.partial(_layernorm_kernel_rows, inv_d=inv_d)
        in_specs = [x_spec, param_spec, param_spec]
        args = (x_in, gamma_in, beta_in)

    out = pl.pallas_call(
        kernel,
        out_shape=jax.ShapeDtypeStruct((n_rows, d_lane), dtype),
        grid_spec=pltpu.PrefetchScalarGridSpec(
            num_scalar_prefetch=0,
            grid=grid,
            in_specs=in_specs,
            out_specs=pl.BlockSpec((tile_rows, d_lane), lambda i: (i, 0)),
        ),
        compiler_params=pltpu.CompilerParams(
            dimension_semantics=("parallel",),      # rows split across TCs (v7x)
            vmem_limit_bytes=_vmem_limit_bytes(),
        ),
        cost_estimate=cost,
    )(*args)

    return out.reshape(orig_shape)


if __name__ == "__main__":
    key = jax.random.PRNGKey(0)
    batch, seq, dim = 2, 8, 32

    x = jax.random.normal(key, (batch, seq, dim), dtype=jnp.float32)

    # Deterministic parameter init matching the module's __init__:
    # gamma = ones(dim) (learnable), beta = zeros(dim) (buffer).
    gamma = jnp.ones((dim,), dtype=jnp.float32)
    beta = jnp.zeros((dim,), dtype=jnp.float32)

    y = layer_norm(x, gamma, beta)
    jax.block_until_ready(y)

    # Reference check in plain JAX (two-pass, like torch).
    mean = jnp.mean(x, axis=-1, keepdims=True)
    var = jnp.mean((x - mean) ** 2, axis=-1, keepdims=True)
    ref = (x - mean) / jnp.sqrt(var + EPS) * gamma + beta
    assert jnp.allclose(y, ref, atol=1e-5, rtol=1e-5), "mismatch vs reference"

    print("KERNEL_OK")
</pallas_src>

<mosaic_0001>
module attributes {stable_mosaic.version = 11 : i64} {
  func.func @_layernorm_kernel_packed(%arg0: i32, %arg1: memref<4x128xf32, #tpu.memory_space<vmem>>, %arg2: memref<1x128xf32, #tpu.memory_space<vmem>>, %arg3: memref<1x128xf32, #tpu.memory_space<vmem>>, %arg4: memref<128x128xf32, #tpu.memory_space<vmem>>, %arg5: memref<4x128xf32, #tpu.memory_space<vmem>>) attributes {dimension_semantics = [#tpu.dimension_semantics<parallel>], iteration_bounds = array<i64: 1>, scalar_prefetch = 0 : i64, scratch_operands = 0 : i64, tpu.core_type = #tpu.core_type<tc>, window_params = [{transform_indices = @transform_0, window_bounds = array<i64: 4, 128>}, {pipeline_mode = #tpu.pipeline_mode<synchronous>, transform_indices = @transform_1, window_bounds = array<i64: 1, 128>}, {pipeline_mode = #tpu.pipeline_mode<synchronous>, transform_indices = @transform_2, window_bounds = array<i64: 1, 128>}, {pipeline_mode = #tpu.pipeline_mode<synchronous>, transform_indices = @transform_3, window_bounds = array<i64: 128, 128>}, {transform_indices = @transform_4, window_bounds = array<i64: 4, 128>}]} {
    %c0 = arith.constant 0 : index
    %c0_0 = arith.constant 0 : index
    %0 = vector.load %arg1[%c0, %c0_0] : memref<4x128xf32, #tpu.memory_space<vmem>>, vector<4x128xf32>
    %c0_1 = arith.constant 0 : index
    %c0_2 = arith.constant 0 : index
    %1 = vector.load %arg4[%c0_1, %c0_2] : memref<128x128xf32, #tpu.memory_space<vmem>>, vector<128x128xf32>
    %cst = arith.constant dense<0.000000e+00> : vector<4x128xf32>
    %2 = tpu.matmul %0, %1, %cst {dimension_numbers = #tpu.dot_dimension_numbers<[1], [0], [0], [1], [0, 0, 1, 1], [], []>} : vector<4x128xf32>, vector<128x128xf32>, vector<4x128xf32> -> vector<4x128xf32>
    %3 = arith.mulf %0, %0 : vector<4x128xf32>
    %cst_3 = arith.constant dense<0.000000e+00> : vector<4x128xf32>
    %4 = tpu.matmul %3, %1, %cst_3 {dimension_numbers = #tpu.dot_dimension_numbers<[1], [0], [0], [1], [0, 0, 1, 1], [], []>} : vector<4x128xf32>, vector<128x128xf32>, vector<4x128xf32> -> vector<4x128xf32>
    %cst_4 = arith.constant 3.125000e-02 : f32
    %5 = vector.broadcast %cst_4 : f32 to vector<4x128xf32>
    %6 = arith.mulf %2, %5 : vector<4x128xf32>
    %cst_5 = arith.constant 3.125000e-02 : f32
    %7 = vector.broadcast %cst_5 : f32 to vector<4x128xf32>
    %8 = arith.mulf %4, %7 : vector<4x128xf32>
    %9 = arith.mulf %6, %6 : vector<4x128xf32>
    %10 = arith.subf %8, %9 : vector<4x128xf32>
    %cst_6 = arith.constant 0.000000e+00 : f32
    %11 = vector.broadcast %cst_6 : f32 to vector<4x128xf32>
    %12 = arith.maximumf %10, %11 : vector<4x128xf32>
    %cst_7 = arith.constant 9.99999974E-6 : f32
    %13 = vector.broadcast %cst_7 : f32 to vector<4x128xf32>
    %14 = arith.addf %12, %13 : vector<4x128xf32>
    %15 = math.rsqrt %14 : vector<4x128xf32>
    %16 = arith.subf %0, %6 : vector<4x128xf32>
    %17 = arith.mulf %16, %15 : vector<4x128xf32>
    %c0_8 = arith.constant 0 : index
    %c0_9 = arith.constant 0 : index
    %18 = vector.load %arg2[%c0_8, %c0_9] : memref<1x128xf32, #tpu.memory_space<vmem>>, vector<1x128xf32>
    %19 = vector.broadcast %18 : vector<1x128xf32> to vector<4x128xf32>
    %20 = arith.mulf %17, %19 : vector<4x128xf32>
    %c0_10 = arith.constant 0 : index
    %c0_11 = arith.constant 0 : index
    %21 = vector.load %arg3[%c0_10, %c0_11] : memref<1x128xf32, #tpu.memory_space<vmem>>, vector<1x128xf32>
    %22 = vector.broadcast %21 : vector<1x128xf32> to vector<4x128xf32>
    %23 = arith.addf %20, %22 : vector<4x128xf32>
    %c0_12 = arith.constant 0 : index
    %c0_13 = arith.constant 0 : index
    %24 = vector.load %arg5[%c0_12, %c0_13] : memref<4x128xf32, #tpu.memory_space<vmem>>, vector<4x128xf32>
    tpu.vector_store %arg5[%c0_12, %c0_13], %23 {strides = array<i32>} : memref<4x128xf32, #tpu.memory_space<vmem>>, vector<4x128xf32>,
    return
  }
  func.func @transform_0(%arg0: i32) -> (i32, i32) {
    %c0_i32 = arith.constant 0 : i32
    %c0_i32_0 = arith.constant 0 : i32
    return %arg0, %c0_i32 : i32, i32
  }
  func.func @transform_1(%arg0: i32) -> (i32, i32) {
    %c0_i32 = arith.constant 0 : i32
    %c0_i32_0 = arith.constant 0 : i32
    %c0_i32_1 = arith.constant 0 : i32
    return %c0_i32, %c0_i32_0 : i32, i32
  }
  func.func @transform_2(%arg0: i32) -> (i32, i32) {
    %c0_i32 = arith.constant 0 : i32
    %c0_i32_0 = arith.constant 0 : i32
    %c0_i32_1 = arith.constant 0 : i32
    return %c0_i32, %c0_i32_0 : i32, i32
  }
  func.func @transform_3(%arg0: i32) -> (i32, i32) {
    %c0_i32 = arith.constant 0 : i32
    %c0_i32_0 = arith.constant 0 : i32
    %c0_i32_1 = arith.constant 0 : i32
    return %c0_i32, %c0_i32_0 : i32, i32
  }
  func.func @transform_4(%arg0: i32) -> (i32, i32) {
    %c0_i32 = arith.constant 0 : i32
    %c0_i32_0 = arith.constant 0 : i32
    return %arg0, %c0_i32 : i32, i32
  }
}

</mosaic_0001>

<llo_original>
// kernel: tpu_custom_call.1
$region0: #{tpu_custom_call.1}
  #allocation0 [shape = 'u32[]', space=smem, size = 0x4, offset = 0x4, fixed_abs, tag = 'smem constant byte address 0x4 - core index']
  #allocation1 [shape = 'u32[144,128]{1,0:T(1,128)}', space=vmem, size = 0x12000, scoped, tag = 'internal scratch']
  %s0 = inlined_call_operand.hbm [shape: f32[4,128], index: 0, kind: input, shape index: {}]
  %s1 = inlined_call_operand.vmem [shape: f32[1,128], index: 1, kind: input, shape index: {}]
  %s2 = inlined_call_operand.vmem [shape: f32[1,128], index: 2, kind: input, shape index: {}]
  %s3 = inlined_call_operand.hbm [shape: f32[128,128], index: 3, kind: input, shape index: {}]
  %s4 = inlined_call_operand.hbm [shape: f32[4,128], index: 4, kind: output, shape index: {}]
  %s5 = sld [smem:[#allocation0]]
  $region34: #{tpu_custom_call.1} parent=0
    _
  %s7 = ssub.s32 1, %s5
  %s8 = scalar_select 0, %s7, %s5
  $region1: #{tpu_custom_call.1} parent=0
    #allocation2 [shape = 'u8[2048]{0}', space=vmem, size = 0x800, scoped, tag = 'input window, operand 0, single buffered']
    #allocation3 [shape = 's32[1]{0}', space=sflag, size = 0x4, scoped, tag = 'scoped memory for tpu_custom_call.1']
    #allocation4 [shape = 's32[1]{0}', space=sflag, size = 0x4, scoped, tag = 'scoped memory for tpu_custom_call.1']
    #allocation5 [shape = 'u8[65536]{0}', space=vmem, size = 0x10000, scoped, tag = 'input window, operand 3, single buffered']
    #allocation6 [shape = 's32[1]{0}', space=sflag, size = 0x4, scoped, tag = 'scoped memory for tpu_custom_call.1']
    #allocation7 [shape = 'u8[2048]{0}', space=vmem, size = 0x800, scoped, tag = 'output window, operand 0, single buffered']
    %9 = vsyncpa [#allocation3], 0
    %10 = vsyncpa [#allocation6], 0
    %11 = vsyncpa [#allocation4], 0
    // Predicated region
    $region2: #{tpu_custom_call.1} parent=1 // pred_check
      _
    $region3: #{tpu_custom_call.1} parent=1 // pred_check_branch
      %13 = sbr.rel (0) target = $region5
    $region4: #{tpu_custom_call.1} parent=1 // pred_region
      %s15 = ssub.s32 64, 64
      %16 = vsyncadd [#allocation3], %s15
      %s18 = sshll.u32 [#allocation2], 4
      %s19 = int_to_ptr.vmem [resolvable:$true] %s18
      %21 = dma.hbm_to_vmem [thread:$0]  %s0, 64, %s19, [#allocation3]
    $region5: #{tpu_custom_call.1} parent=1 // pred_fallthru
      _
    // Predicated region
    $region6: #{tpu_custom_call.1} parent=1 // pred_check
      _
    $region7: #{tpu_custom_call.1} parent=1 // pred_check_branch
      %23 = sbr.rel (0) target = $region9
    $region8: #{tpu_custom_call.1} parent=1 // pred_region
      _
    $region9: #{tpu_custom_call.1} parent=1 // pred_fallthru
      _
    // Predicated region
    $region10: #{tpu_custom_call.1} parent=1 // pred_check
      _
    $region11: #{tpu_custom_call.1} parent=1 // pred_check_branch
      %25 = sbr.rel (0) target = $region13
    $region12: #{tpu_custom_call.1} parent=1 // pred_region
      _
    $region13: #{tpu_custom_call.1} parent=1 // pred_fallthru
      _
    // Predicated region
    $region14: #{tpu_custom_call.1} parent=1 // pred_check
      _
    $region15: #{tpu_custom_call.1} parent=1 // pred_check_branch
      %27 = sbr.rel (0) target = $region17
    $region16: #{tpu_custom_call.1} parent=1 // pred_region
      %s29 = ssub.s32 2048, 2048
      %30 = vsyncadd [#allocation6], %s29
      %s31 = sshll.u32 [#allocation5], 4
      %s32 = int_to_ptr.vmem [resolvable:$true] %s31
      %37 = dma.hbm_to_vmem [thread:$0]  %s3, 2048, %s32, [#allocation6], 128, 128, 8
    $region17: #{tpu_custom_call.1} parent=1 // pred_fallthru
      _
    // Predicated region
    $region18: #{tpu_custom_call.1} parent=1 // pred_check
      _
    $region19: #{tpu_custom_call.1} parent=1 // pred_check_branch
      %39 = sbr.rel (0) target = $region21
    $region20: #{tpu_custom_call.1} parent=1 // pred_region
      %40 = dma.done [#allocation3], 64
    $region21: #{tpu_custom_call.1} parent=1 // pred_fallthru
      _
    // Predicated region
    $region22: #{tpu_custom_call.1} parent=1 // pred_check
      _
    $region23: #{tpu_custom_call.1} parent=1 // pred_check_branch
      %42 = sbr.rel (0) target = $region25
    $region24: #{tpu_custom_call.1} parent=1 // pred_region
      %43 = dma.done [#allocation6], 2048
    $region25: #{tpu_custom_call.1} parent=1 // pred_fallthru
      _
    %v44 = vld [vmem:[#allocation2] sm:$0xf]
    %v45 = vld [vmem:[#allocation5] sm:$0xff]
    %v46 = vld [vmem:[#allocation5 + $0x8] sm:$0xff]
    %v47 = vld [vmem:[#allocation5 + $0x10] sm:$0xff]
    %v48 = vld [vmem:[#allocation5 + $0x18] sm:$0xff]
    %v49 = vld [vmem:[#allocation5 + $0x20] sm:$0xff]
    %v50 = vld [vmem:[#allocation5 + $0x28] sm:$0xff]
    %v51 = vld [vmem:[#allocation5 + $0x30] sm:$0xff]
    %v52 = vld [vmem:[#allocation5 + $0x38] sm:$0xff]
    %v53 = vld [vmem:[#allocation5 + $0x40] sm:$0xff]
    %v54 = vld [vmem:[#allocation5 + $0x48] sm:$0xff]
    %v55 = vld [vmem:[#allocation5 + $0x50] sm:$0xff]
    %v56 = vld [vmem:[#allocation5 + $0x58] sm:$0xff]
    %v57 = vld [vmem:[#allocation5 + $0x60] sm:$0xff]
    %v58 = vld [vmem:[#allocation5 + $0x68] sm:$0xff]
    %v59 = vld [vmem:[#allocation5 + $0x70] sm:$0xff]
    %v60 = vld [vmem:[#allocation5 + $0x78] sm:$0xff]
    %61 = vmatprep.subr.mxu0 0.0
    %62 = vmatpush1.msra.mxu0 %v45
    %63 = vmatprep.subr.mxu0 0.0
    %64 = vmatpush1.msra.mxu0 %v46
    %65 = vmatprep.subr.mxu0 0.0
    %66 = vmatpush1.msra.mxu0 %v47
    %67 = vmatprep.subr.mxu0 0.0
    %68 = vmatpush1.msra.mxu0 %v48
    %69 = vmatprep.subr.mxu0 0.0
    %70 = vmatpush1.msra.mxu0 %v49
    %71 = vmatprep.subr.mxu0 0.0
    %72 = vmatpush1.msra.mxu0 %v50
    %73 = vmatprep.subr.mxu0 0.0
    %74 = vmatpush1.msra.mxu0 %v51
    %75 = vmatprep.subr.mxu0 0.0
    %76 = vmatpush1.msra.mxu0 %v52
    %77 = vmatprep.subr.mxu0 0.0
    %78 = vmatpush1.msra.mxu0 %v53
    %79 = vmatprep.subr.mxu0 0.0
    %80 = vmatpush1.msra.mxu0 %v54
    %81 = vmatprep.subr.mxu0 0.0
    %82 = vmatpush1.msra.mxu0 %v55
    %83 = vmatprep.subr.mxu0 0.0
    %84 = vmatpush1.msra.mxu0 %v56
    %85 = vmatprep.subr.mxu0 0.0
    %86 = vmatpush1.msra.mxu0 %v57
    %87 = vmatprep.subr.mxu0 0.0
    %88 = vmatpush1.msra.mxu0 %v58
    %89 = vmatprep.subr.mxu0 0.0
    %90 = vmatpush1.msra.mxu0 %v59
    %91 = vmatprep.subr.mxu0 0.0
    %92 = vmatpush1.msra.mxu0 %v60
    %93 = vmatprep.subr.mxu0 0.0
    %94 = vmatpush1.msra.mxu0 0.0
    %95 = vmatprep.subr.mxu0 0.0
    %96 = vmatpush1.msra.mxu0 0.0
    %97 = vmatprep.subr.mxu0 0.0
    %98 = vmatpush1.msra.mxu0 0.0
    %99 = vmatprep.subr.mxu0 0.0
    %100 = vmatpush1.msra.mxu0 0.0
    %101 = vmatprep.subr.mxu0 0.0
    %102 = vmatpush1.msra.mxu0 0.0
    %103 = vmatprep.subr.mxu0 0.0
    %104 = vmatpush1.msra.mxu0 0.0
    %105 = vmatprep.subr.mxu0 0.0
    %106 = vmatpush1.msra.mxu0 0.0
    %107 = vmatprep.subr.mxu0 0.0
    %108 = vmatpush1.msra.mxu0 0.0
    %109 = vmatprep.subr.mxu0 0.0
    %110 = vmatpush1.msra.mxu0 0.0
    %111 = vmatprep.subr.mxu0 0.0
    %112 = vmatpush1.msra.mxu0 0.0
    %113 = vmatprep.subr.mxu0 0.0
    %114 = vmatpush1.msra.mxu0 0.0
    %115 = vmatprep.subr.mxu0 0.0
    %116 = vmatpush1.msra.mxu0 0.0
    %117 = vmatprep.subr.mxu0 0.0
    %118 = vmatpush1.msra.mxu0 0.0
    %119 = vmatprep.subr.mxu0 0.0
    %120 = vmatpush1.msra.mxu0 0.0
    %121 = vmatprep.subr.mxu0 0.0
    %122 = vmatpush1.msra.mxu0 0.0
    %123 = vmatprep.subr.mxu0 0.0
    %124 = vmatpush1.msra.mxu0 0.0
    %125 = vmatprep.mubr.f32.mxu0 0.0
    %126 = vmatmul.mubr.f32.gmra.mrb[0].mxu0 %v44
    %v127 = vpop.f32.mrb[0].mxu0
    %v128 = vadd.f32 0.0, %v127
    %v129 = vpop.f32.mrb[0].mxu0
    %130 = vdwg.mxu0
    %v131 = vmul.f32 %v44, %v44
    %132 = vmatprep.subr.mxu0 0.0
    %133 = vmatpush1.msra.mxu0 %v45
    %134 = vmatprep.subr.mxu0 0.0
    %135 = vmatpush1.msra.mxu0 %v46
    %136 = vmatprep.subr.mxu0 0.0
    %137 = vmatpush1.msra.mxu0 %v47
    %138 = vmatprep.subr.mxu0 0.0
    %139 = vmatpush1.msra.mxu0 %v48
    %140 = vmatprep.subr.mxu0 0.0
    %141 = vmatpush1.msra.mxu0 %v49
    %142 = vmatprep.subr.mxu0 0.0
    %143 = vmatpush1.msra.mxu0 %v50
    %144 = vmatprep.subr.mxu0 0.0
    %145 = vmatpush1.msra.mxu0 %v51
    %146 = vmatprep.subr.mxu0 0.0
    %147 = vmatpush1.msra.mxu0 %v52
    %148 = vmatprep.subr.mxu0 0.0
    %149 = vmatpush1.msra.mxu0 %v53
    %150 = vmatprep.subr.mxu0 0.0
    %151 = vmatpush1.msra.mxu0 %v54
    %152 = vmatprep.subr.mxu0 0.0
    %153 = vmatpush1.msra.mxu0 %v55
    %154 = vmatprep.subr.mxu0 0.0
    %155 = vmatpush1.msra.mxu0 %v56
    %156 = vmatprep.subr.mxu0 0.0
    %157 = vmatpush1.msra.mxu0 %v57
    %158 = vmatprep.subr.mxu0 0.0
    %159 = vmatpush1.msra.mxu0 %v58
    %160 = vmatprep.subr.mxu0 0.0
    %161 = vmatpush1.msra.mxu0 %v59
    %162 = vmatprep.subr.mxu0 0.0
    %163 = vmatpush1.msra.mxu0 %v60
    %164 = vmatprep.subr.mxu0 0.0
    %165 = vmatpush1.msra.mxu0 0.0
    %166 = vmatprep.subr.mxu0 0.0
    %167 = vmatpush1.msra.mxu0 0.0
    %168 = vmatprep.subr.mxu0 0.0
    %169 = vmatpush1.msra.mxu0 0.0
    %170 = vmatprep.subr.mxu0 0.0
    %171 = vmatpush1.msra.mxu0 0.0
    %172 = vmatprep.subr.mxu0 0.0
    %173 = vmatpush1.msra.mxu0 0.0
    %174 = vmatprep.subr.mxu0 0.0
    %175 = vmatpush1.msra.mxu0 0.0
    %176 = vmatprep.subr.mxu0 0.0
    %177 = vmatpush1.msra.mxu0 0.0
    %178 = vmatprep.subr.mxu0 0.0
    %179 = vmatpush1.msra.mxu0 0.0
    %180 = vmatprep.subr.mxu0 0.0
    %181 = vmatpush1.msra.mxu0 0.0
    %182 = vmatprep.subr.mxu0 0.0
    %183 = vmatpush1.msra.mxu0 0.0
    %184 = vmatprep.subr.mxu0 0.0
    %185 = vmatpush1.msra.mxu0 0.0
    %186 = vmatprep.subr.mxu0 0.0
    %187 = vmatpush1.msra.mxu0 0.0
    %188 = vmatprep.subr.mxu0 0.0
    %189 = vmatpush1.msra.mxu0 0.0
    %190 = vmatprep.subr.mxu0 0.0
    %191 = vmatpush1.msra.mxu0 0.0
    %192 = vmatprep.subr.mxu0 0.0
    %193 = vmatpush1.msra.mxu0 0.0
    %194 = vmatprep.subr.mxu0 0.0
    %195 = vmatpush1.msra.mxu0 0.0
    %196 = vmatprep.mubr.f32.mxu0 0.0
    %197 = vmatmul.mubr.f32.gmra.mrb[0].mxu0 %v131
    %v198 = vpop.f32.mrb[0].mxu0
    %v199 = vadd.f32 0.0, %v198
    %v200 = vpop.f32.mrb[0].mxu0
    %201 = vdwg.mxu0
    %v202 = vmul.f32 %v128, 0.03125
    %v203 = vmul.f32 %v199, 0.03125
    %v204 = vmul.f32 %v202, %v202
    %v205 = vsub.f32 %v203, %v204
    %v206 = vmax.f32 %v205, 0.0
    %v207 = vadd.f32 %v206, 1e-05
    %v208 = vrsqrt.pop %v207
    %v209 = vsub.f32 %v44, %v202
    %v210 = vmul.f32 %v209, %v208
    %v211 = vld [vmem:[%s1] sm:$0x1]
    %v213 = vlaneseq
    %v214 = vshrl.u32 %v213, 7
    %v215 = vsub.s32 0, %v214
    %v216 = vrot.slane %v211, %v215
    %v218 = vmul.f32 %v210, %v216
    %v219 = vld [vmem:[%s2] sm:$0x1]
    %v221 = vlaneseq
    %v222 = vshrl.u32 %v221, 7
    %v223 = vsub.s32 0, %v222
    %v224 = vrot.slane %v219, %v223
    %v226 = vadd.f32 %v218, %v224
    %227 = vst [vmem:[#allocation7] sm:$0xf] %v226
    // Predicated region
    $region26: #{tpu_custom_call.1} parent=1 // pred_check
      _
    $region27: #{tpu_custom_call.1} parent=1 // pred_check_branch
      %229 = sbr.rel (0) target = $region29
    $region28: #{tpu_custom_call.1} parent=1 // pred_region
      %s231 = ssub.s32 64, 64
      %232 = vsyncadd [#allocation4], %s231
      %s234 = sshll.u32 [#allocation7], 4
      %s235 = int_to_ptr.vmem [resolvable:$true] %s234
      %237 = dma.vmem_to_hbm [thread:$0]  %s235, 64, %s4, [#allocation4]
    $region29: #{tpu_custom_call.1} parent=1 // pred_fallthru
      _
    // Predicated region
    $region30: #{tpu_custom_call.1} parent=1 // pred_check
      _
    $region31: #{tpu_custom_call.1} parent=1 // pred_check_branch
      %239 = sbr.rel (0) target = $region33
    $region32: #{tpu_custom_call.1} parent=1 // pred_region
      %240 = dma.done [#allocation4], 64
    $region33: #{tpu_custom_call.1} parent=1 // pred_fallthru
      _
    %241 = vsyncpa [#allocation3], 1
    %242 = vsyncpa [#allocation6], 1
    %243 = vsyncpa [#allocation4], 1

</llo_original>
